<compile_context>
chip_gen: v6e
topology: v6e:2x2x1
jax: 0.10.0
libtpu: 0.0.40
codegen_flags: <defaults>
</compile_context>

<pallas_src>
import math

import jax
import jax.numpy as jnp
from jax.experimental import pallas as pl
from jax.experimental.pallas import tpu as pltpu

LANE = 128      # TPU vreg lane width
SUBLANE = 8     # TPU vreg sublane count


def _round_up(x, m):
    return (x + m - 1) // m * m


def _cdiv(a, b):
    return -(-a // b)


# ---------------------------------------------------------------------------
# Kernel
# ---------------------------------------------------------------------------
def mlp_kernel(x_ref, w1_ref, b1_ref, w2_ref, b2_ref, w3_ref, b3_ref,
               w4_ref, b4_ref, o_ref):
    """One batch tile of the 4-layer MLP; 4 back-to-back MXU GEMMs.

    x arrives as f32 and is cast to bf16 in-kernel (saves a wrapper-side
    pad/cast pass over the dominant HBM stream).  Weights are bf16 and stay
    resident in VMEM across grid steps.  Each dot accumulates in f32;
    bias-add + ReLU run in f32 on the VPU (v5e-safe); intermediates are cast
    back to bf16 so the next GEMM runs at bf16 MXU rate.  The final result is
    stored as bf16 (halves output writeback traffic).
    """
    cd = w1_ref.dtype                      # MXU compute dtype (bf16)
    x = x_ref[...].astype(cd)              # in-kernel f32 -> bf16 cast

    h = jnp.dot(x, w1_ref[...], preferred_element_type=jnp.float32) + b1_ref[...]
    h = jnp.maximum(h, 0.0).astype(cd)

    h = jnp.dot(h, w2_ref[...], preferred_element_type=jnp.float32) + b2_ref[...]
    h = jnp.maximum(h, 0.0).astype(cd)

    h = jnp.dot(h, w3_ref[...], preferred_element_type=jnp.float32) + b3_ref[...]
    h = jnp.maximum(h, 0.0).astype(cd)

    o_ref[...] = (jnp.dot(h, w4_ref[...], preferred_element_type=jnp.float32)
                  + b4_ref[...]).astype(o_ref.dtype)


# ---------------------------------------------------------------------------
# Parameter preparation (pad feature dims to 128 lanes, cast weights to bf16)
# ---------------------------------------------------------------------------
def prepare_params(params, compute_dtype=jnp.bfloat16):
    """Zero-pad every layer's [in, out] dims to multiples of 128 and cast the
    weights to the MXU compute dtype.  Biases stay f32 (f32 epilogue).  Zero
    padding preserves the math exactly (padded columns/rows contribute 0)."""
    padded = {}
    for name, (w, b) in params.items():
        k, n = w.shape
        kp, np_ = _round_up(k, LANE), _round_up(n, LANE)
        w_p = jnp.zeros((kp, np_), compute_dtype).at[:k, :n].set(w.astype(compute_dtype))
        b_p = jnp.zeros((1, np_), jnp.float32).at[:, :n].set(b.astype(jnp.float32))
        padded[name] = (w_p, b_p)
    return padded


# ---------------------------------------------------------------------------
# Batch-tile selection
# ---------------------------------------------------------------------------
def _choose_batch_tile(B, block_b):
    """Pick (tb, b_pad): tb is a multiple of 8 (sublane), <= block_b, chosen so
    the grid has >= 2 steps whenever the batch allows it (v7x megacore) and so
    ragged batches waste at most ~one sublane group of rows, never up to a
    whole tile."""
    b8 = _round_up(B, SUBLANE)                 # pad batch only to a sublane multiple
    n_tiles = max(2, _cdiv(b8, block_b))       # >= 2 grid steps when possible
    tb = min(block_b, max(SUBLANE, _round_up(_cdiv(b8, n_tiles), SUBLANE)))
    b_pad = _round_up(b8, tb)
    return tb, b_pad


# ---------------------------------------------------------------------------
# Forward wrapper
# ---------------------------------------------------------------------------
def mlp_forward(x_nchw, padded_params, num_classes, *, block_b=1024):
    """x_nchw: [B, C, H, W].  padded_params: output of prepare_params.
    Returns f32 logits [B, num_classes]."""
    B = x_nchw.shape[0]
    x = x_nchw.reshape(B, -1)                       # torch x.flatten(1), stays f32
    in_features = x.shape[1]

    w1, b1 = padded_params["fc_1"]
    w2, b2 = padded_params["fc_2"]
    w3, b3 = padded_params["fc_3"]
    w4, b4 = padded_params["fc_4"]
    k1 = w1.shape[0]                                # lane-padded input features
    n_out = w4.shape[1]                             # lane-padded num_classes

    tb, b_pad = _choose_batch_tile(B, block_b)

    # Only materialize padding when actually required (no extra pass over x in
    # the common case).  x stays f32; the bf16 cast happens inside the kernel.
    if b_pad != B or k1 != in_features:
        x = jnp.pad(x, ((0, b_pad - B), (0, k1 - in_features)))

    grid = (b_pad // tb,)

    def resident(shape):
        # Constant block index every grid step -> operand stays VMEM-resident
        # (Mosaic elides the re-DMA).  The extra pipeline buffer for these
        # operands costs <0.5 MiB at these widths, so we don't bother with
        # pl.Buffered(1).
        # TODO(synk): if layer widths ever reach >=4096, switch these specs to
        # pipeline_mode=pl.Buffered(1) and add a K-tiling "arbitrary" grid axis
        # with a VMEM accumulator to keep VMEM in check on v7x (64 MiB).
        return pl.BlockSpec(shape, lambda i: (0,) * len(shape))

    flops = 2 * b_pad * (k1 * w1.shape[1]
                         + w2.shape[0] * w2.shape[1]
                         + w3.shape[0] * w3.shape[1]
                         + w4.shape[0] * n_out)
    bytes_accessed = (x.size * x.dtype.itemsize                      # f32 x read
                      + sum(w.size * w.dtype.itemsize + b.size * b.dtype.itemsize
                            for w, b in padded_params.values())      # resident params
                      + b_pad * n_out * 2)                           # bf16 out write

    out_padded = pl.pallas_call(
        mlp_kernel,
        out_shape=jax.ShapeDtypeStruct((b_pad, n_out), jnp.bfloat16),
        grid=grid,
        in_specs=[
            pl.BlockSpec((tb, k1), lambda i: (i, 0)),   # x: tiled over batch, f32
            resident(w1.shape), resident(b1.shape),
            resident(w2.shape), resident(b2.shape),
            resident(w3.shape), resident(b3.shape),
            resident(w4.shape), resident(b4.shape),
        ],
        out_specs=pl.BlockSpec((tb, n_out), lambda i: (i, 0)),
        compiler_params=pltpu.CompilerParams(
            dimension_semantics=("parallel",),   # v7x: split batch over 2 TCs
            vmem_limit_bytes=48 << 20,           # above v5e/v6e scoped defaults, < v7x 64 MiB
        ),
        cost_estimate=pl.CostEstimate(
            flops=flops, transcendentals=0, bytes_accessed=bytes_accessed),
    )(x, w1, b1, w2, b2, w3, b3, w4, b4)

    # Drop batch/row padding and the padded class lanes; upcast bf16 -> f32.
    return out_padded[:B, :num_classes].astype(jnp.float32)


# ---------------------------------------------------------------------------
# Init (variance scaling, fan_in, truncated normal; bias = 0) & reference
# ---------------------------------------------------------------------------
def init_linear(key, in_features, out_features):
    """W stored as [in_features, out_features] (transposed vs. torch), b: [1, out]."""
    stddev = math.sqrt(1.0 / max(1.0, in_features))
    w = jax.random.truncated_normal(
        key, -2.0, 2.0, (in_features, out_features), dtype=jnp.float32) * stddev
    b = jnp.zeros((1, out_features), dtype=jnp.float32)
    return w, b


def reference_mlp(x_nchw, params, compute_dtype=jnp.bfloat16):
    """Pure-JAX reference mirroring the kernel's cast path
    (bf16 inputs/weights, f32 accumulation + epilogue, bf16 output)."""
    x = x_nchw.reshape(x_nchw.shape[0], -1).astype(compute_dtype)
    (w1, b1), (w2, b2) = params["fc_1"], params["fc_2"]
    (w3, b3), (w4, b4) = params["fc_3"], params["fc_4"]

    def layer(h, w, b, relu):
        y = jnp.dot(h, w.astype(compute_dtype),
                    preferred_element_type=jnp.float32) + b
        if relu:
            return jnp.maximum(y, 0.0).astype(compute_dtype)
        return y

    h = layer(x, w1, b1, True)
    h = layer(h, w2, b2, True)
    h = layer(h, w3, b3, True)
    out = layer(h, w4, b4, False)
    return out.astype(compute_dtype).astype(jnp.float32)


if __name__ == "__main__":
    # Small shapes consistent with the module: x [B, C, H, W] -> in_channels = C*H*W.
    B, C, H, W = 2, 4, 16, 16
    in_channels = C * H * W          # 1024
    width = 32
    num_classes = 10

    key = jax.random.PRNGKey(0)
    kx, k1, k2, k3, k4 = jax.random.split(key, 5)

    x = jax.random.normal(kx, (B, C, H, W), dtype=jnp.float32)

    params = {
        "fc_1": init_linear(k1, in_channels, width),
        "fc_2": init_linear(k2, width, width),
        "fc_3": init_linear(k3, width, width),
        "fc_4": init_linear(k4, width, num_classes),
    }
    padded_params = prepare_params(params, compute_dtype=jnp.bfloat16)

    out = mlp_forward(x, padded_params, num_classes)
    out = jax.block_until_ready(out)

    ref = reference_mlp(x, params)
    assert out.shape == (B, num_classes), out.shape
    assert jnp.allclose(out, ref, atol=1e-2, rtol=1e-2), "mismatch vs reference"

    print("KERNEL_OK")
</pallas_src>

<mosaic_0001>
module attributes {stable_mosaic.version = 11 : i64} {
  func.func @mlp_kernel(%arg0: i32, %arg1: memref<8x1024xf32, #tpu.memory_space<vmem>>, %arg2: memref<1024x128xbf16, #tpu.memory_space<vmem>>, %arg3: memref<1x128xf32, #tpu.memory_space<vmem>>, %arg4: memref<128x128xbf16, #tpu.memory_space<vmem>>, %arg5: memref<1x128xf32, #tpu.memory_space<vmem>>, %arg6: memref<128x128xbf16, #tpu.memory_space<vmem>>, %arg7: memref<1x128xf32, #tpu.memory_space<vmem>>, %arg8: memref<128x128xbf16, #tpu.memory_space<vmem>>, %arg9: memref<1x128xf32, #tpu.memory_space<vmem>>, %arg10: memref<8x128xbf16, #tpu.memory_space<vmem>>) attributes {dimension_semantics = [#tpu.dimension_semantics<parallel>], iteration_bounds = array<i64: 1>, scalar_prefetch = 0 : i64, scratch_operands = 0 : i64, tpu.core_type = #tpu.core_type<tc>, window_params = [{transform_indices = @transform_0, window_bounds = array<i64: 8, 1024>}, {pipeline_mode = #tpu.pipeline_mode<synchronous>, transform_indices = @transform_1, window_bounds = array<i64: 1024, 128>}, {pipeline_mode = #tpu.pipeline_mode<synchronous>, transform_indices = @transform_2, window_bounds = array<i64: 1, 128>}, {pipeline_mode = #tpu.pipeline_mode<synchronous>, transform_indices = @transform_3, window_bounds = array<i64: 128, 128>}, {pipeline_mode = #tpu.pipeline_mode<synchronous>, transform_indices = @transform_4, window_bounds = array<i64: 1, 128>}, {pipeline_mode = #tpu.pipeline_mode<synchronous>, transform_indices = @transform_5, window_bounds = array<i64: 128, 128>}, {pipeline_mode = #tpu.pipeline_mode<synchronous>, transform_indices = @transform_6, window_bounds = array<i64: 1, 128>}, {pipeline_mode = #tpu.pipeline_mode<synchronous>, transform_indices = @transform_7, window_bounds = array<i64: 128, 128>}, {pipeline_mode = #tpu.pipeline_mode<synchronous>, transform_indices = @transform_8, window_bounds = array<i64: 1, 128>}, {transform_indices = @transform_9, window_bounds = array<i64: 8, 128>}]} {
    %c0 = arith.constant 0 : index
    %c0_0 = arith.constant 0 : index
    %0 = vector.load %arg1[%c0, %c0_0] : memref<8x1024xf32, #tpu.memory_space<vmem>>, vector<8x1024xf32>
    %1 = arith.truncf %0 : vector<8x1024xf32> to vector<8x1024xbf16>
    %c0_1 = arith.constant 0 : index
    %c0_2 = arith.constant 0 : index
    %2 = vector.load %arg2[%c0_1, %c0_2] : memref<1024x128xbf16, #tpu.memory_space<vmem>>, vector<1024x128xbf16>
    %cst = arith.constant dense<0.000000e+00> : vector<8x128xf32>
    %3 = tpu.matmul %1, %2, %cst {dimension_numbers = #tpu.dot_dimension_numbers<[1], [0], [0], [1], [0, 0, 1, 1], [], []>} : vector<8x1024xbf16>, vector<1024x128xbf16>, vector<8x128xf32> -> vector<8x128xf32>
    %c0_3 = arith.constant 0 : index
    %c0_4 = arith.constant 0 : index
    %4 = vector.load %arg3[%c0_3, %c0_4] : memref<1x128xf32, #tpu.memory_space<vmem>>, vector<1x128xf32>
    %5 = vector.broadcast %4 : vector<1x128xf32> to vector<8x128xf32>
    %6 = arith.addf %3, %5 : vector<8x128xf32>
    %cst_5 = arith.constant 0.000000e+00 : f32
    %7 = vector.broadcast %cst_5 : f32 to vector<8x128xf32>
    %8 = arith.maximumf %6, %7 : vector<8x128xf32>
    %9 = arith.truncf %8 : vector<8x128xf32> to vector<8x128xbf16>
    %c0_6 = arith.constant 0 : index
    %c0_7 = arith.constant 0 : index
    %10 = vector.load %arg4[%c0_6, %c0_7] : memref<128x128xbf16, #tpu.memory_space<vmem>>, vector<128x128xbf16>
    %cst_8 = arith.constant dense<0.000000e+00> : vector<8x128xf32>
    %11 = tpu.matmul %9, %10, %cst_8 {dimension_numbers = #tpu.dot_dimension_numbers<[1], [0], [0], [1], [0, 0, 1, 1], [], []>} : vector<8x128xbf16>, vector<128x128xbf16>, vector<8x128xf32> -> vector<8x128xf32>
    %c0_9 = arith.constant 0 : index
    %c0_10 = arith.constant 0 : index
    %12 = vector.load %arg5[%c0_9, %c0_10] : memref<1x128xf32, #tpu.memory_space<vmem>>, vector<1x128xf32>
    %13 = vector.broadcast %12 : vector<1x128xf32> to vector<8x128xf32>
    %14 = arith.addf %11, %13 : vector<8x128xf32>
    %cst_11 = arith.constant 0.000000e+00 : f32
    %15 = vector.broadcast %cst_11 : f32 to vector<8x128xf32>
    %16 = arith.maximumf %14, %15 : vector<8x128xf32>
    %17 = arith.truncf %16 : vector<8x128xf32> to vector<8x128xbf16>
    %c0_12 = arith.constant 0 : index
    %c0_13 = arith.constant 0 : index
    %18 = vector.load %arg6[%c0_12, %c0_13] : memref<128x128xbf16, #tpu.memory_space<vmem>>, vector<128x128xbf16>
    %cst_14 = arith.constant dense<0.000000e+00> : vector<8x128xf32>
    %19 = tpu.matmul %17, %18, %cst_14 {dimension_numbers = #tpu.dot_dimension_numbers<[1], [0], [0], [1], [0, 0, 1, 1], [], []>} : vector<8x128xbf16>, vector<128x128xbf16>, vector<8x128xf32> -> vector<8x128xf32>
    %c0_15 = arith.constant 0 : index
    %c0_16 = arith.constant 0 : index
    %20 = vector.load %arg7[%c0_15, %c0_16] : memref<1x128xf32, #tpu.memory_space<vmem>>, vector<1x128xf32>
    %21 = vector.broadcast %20 : vector<1x128xf32> to vector<8x128xf32>
    %22 = arith.addf %19, %21 : vector<8x128xf32>
    %cst_17 = arith.constant 0.000000e+00 : f32
    %23 = vector.broadcast %cst_17 : f32 to vector<8x128xf32>
    %24 = arith.maximumf %22, %23 : vector<8x128xf32>
    %25 = arith.truncf %24 : vector<8x128xf32> to vector<8x128xbf16>
    %c0_18 = arith.constant 0 : index
    %c0_19 = arith.constant 0 : index
    %26 = vector.load %arg8[%c0_18, %c0_19] : memref<128x128xbf16, #tpu.memory_space<vmem>>, vector<128x128xbf16>
    %cst_20 = arith.constant dense<0.000000e+00> : vector<8x128xf32>
    %27 = tpu.matmul %25, %26, %cst_20 {dimension_numbers = #tpu.dot_dimension_numbers<[1], [0], [0], [1], [0, 0, 1, 1], [], []>} : vector<8x128xbf16>, vector<128x128xbf16>, vector<8x128xf32> -> vector<8x128xf32>
    %c0_21 = arith.constant 0 : index
    %c0_22 = arith.constant 0 : index
    %28 = vector.load %arg9[%c0_21, %c0_22] : memref<1x128xf32, #tpu.memory_space<vmem>>, vector<1x128xf32>
    %29 = vector.broadcast %28 : vector<1x128xf32> to vector<8x128xf32>
    %30 = arith.addf %27, %29 : vector<8x128xf32>
    %31 = arith.truncf %30 : vector<8x128xf32> to vector<8x128xbf16>
    %c0_23 = arith.constant 0 : index
    %c0_24 = arith.constant 0 : index
    %32 = vector.load %arg10[%c0_23, %c0_24] : memref<8x128xbf16, #tpu.memory_space<vmem>>, vector<8x128xbf16>
    tpu.vector_store %arg10[%c0_23, %c0_24], %31 {strides = array<i32>} : memref<8x128xbf16, #tpu.memory_space<vmem>>, vector<8x128xbf16>,
    return
  }
  func.func @transform_0(%arg0: i32) -> (i32, i32) {
    %c0_i32 = arith.constant 0 : i32
    %c0_i32_0 = arith.constant 0 : i32
    return %arg0, %c0_i32 : i32, i32
  }
  func.func @transform_1(%arg0: i32) -> (i32, i32) {
    %c0_i32 = arith.constant 0 : i32
    %c0_i32_0 = arith.constant 0 : i32
    %c0_i32_1 = arith.constant 0 : i32
    return %c0_i32, %c0_i32_0 : i32, i32
  }
  func.func @transform_2(%arg0: i32) -> (i32, i32) {
    %c0_i32 = arith.constant 0 : i32
    %c0_i32_0 = arith.constant 0 : i32
    %c0_i32_1 = arith.constant 0 : i32
    return %c0_i32, %c0_i32_0 : i32, i32
  }
  func.func @transform_3(%arg0: i32) -> (i32, i32) {
    %c0_i32 = arith.constant 0 : i32
    %c0_i32_0 = arith.constant 0 : i32
    %c0_i32_1 = arith.constant 0 : i32
    return %c0_i32, %c0_i32_0 : i32, i32
  }
  func.func @transform_4(%arg0: i32) -> (i32, i32) {
    %c0_i32 = arith.constant 0 : i32
    %c0_i32_0 = arith.constant 0 : i32
    %c0_i32_1 = arith.constant 0 : i32
    return %c0_i32, %c0_i32_0 : i32, i32
  }
  func.func @transform_5(%arg0: i32) -> (i32, i32) {
    %c0_i32 = arith.constant 0 : i32
    %c0_i32_0 = arith.constant 0 : i32
    %c0_i32_1 = arith.constant 0 : i32
    return %c0_i32, %c0_i32_0 : i32, i32
  }
  func.func @transform_6(%arg0: i32) -> (i32, i32) {
    %c0_i32 = arith.constant 0 : i32
    %c0_i32_0 = arith.constant 0 : i32
    %c0_i32_1 = arith.constant 0 : i32
    return %c0_i32, %c0_i32_0 : i32, i32
  }
  func.func @transform_7(%arg0: i32) -> (i32, i32) {
    %c0_i32 = arith.constant 0 : i32
    %c0_i32_0 = arith.constant 0 : i32
    %c0_i32_1 = arith.constant 0 : i32
    return %c0_i32, %c0_i32_0 : i32, i32
  }
  func.func @transform_8(%arg0: i32) -> (i32, i32) {
    %c0_i32 = arith.constant 0 : i32
    %c0_i32_0 = arith.constant 0 : i32
    %c0_i32_1 = arith.constant 0 : i32
    return %c0_i32, %c0_i32_0 : i32, i32
  }
  func.func @transform_9(%arg0: i32) -> (i32, i32) {
    %c0_i32 = arith.constant 0 : i32
    %c0_i32_0 = arith.constant 0 : i32
    return %arg0, %c0_i32 : i32, i32
  }
}

</mosaic_0001>

<llo_original>
// kernel: tpu_custom_call.1
$region0: #{tpu_custom_call.1}
  #allocation0 [shape = 'u32[]', space=smem, size = 0x4, offset = 0x4, fixed_abs, tag = 'smem constant byte address 0x4 - core index']
  #allocation1 [shape = 'u32[144,128]{1,0:T(1,128)}', space=vmem, size = 0x12000, scoped, tag = 'internal scratch']
  %s0 = inlined_call_operand.hbm [shape: f32[8,1024], index: 0, kind: input, shape index: {}]
  %s1 = inlined_call_operand.hbm [shape: bf16[1024,128], index: 1, kind: input, shape index: {}]
  %s2 = inlined_call_operand.vmem [shape: f32[1,128], index: 2, kind: input, shape index: {}]
  %s3 = inlined_call_operand.hbm [shape: bf16[128,128], index: 3, kind: input, shape index: {}]
  %s4 = inlined_call_operand.vmem [shape: f32[1,128], index: 4, kind: input, shape index: {}]
  %s5 = inlined_call_operand.hbm [shape: bf16[128,128], index: 5, kind: input, shape index: {}]
  %s6 = inlined_call_operand.vmem [shape: f32[1,128], index: 6, kind: input, shape index: {}]
  %s7 = inlined_call_operand.hbm [shape: bf16[128,128], index: 7, kind: input, shape index: {}]
  %s8 = inlined_call_operand.vmem [shape: f32[1,128], index: 8, kind: input, shape index: {}]
  %s9 = inlined_call_operand.hbm [shape: bf16[8,128], index: 9, kind: output, shape index: {}]
  %s10 = sld [smem:[#allocation0]]
  $region66: #{tpu_custom_call.1} parent=0
    _
  %s12 = ssub.s32 1, %s10
  %s13 = scalar_select 0, %s12, %s10
  $region1: #{tpu_custom_call.1} parent=0
    #allocation2 [shape = 'u8[32768]{0}', space=vmem, size = 0x8000, scoped, tag = 'input window, operand 0, single buffered']
    #allocation3 [shape = 's32[1]{0}', space=sflag, size = 0x4, scoped, tag = 'scoped memory for tpu_custom_call.1']
    #allocation4 [shape = 's32[1]{0}', space=sflag, size = 0x4, scoped, tag = 'scoped memory for tpu_custom_call.1']
    #allocation5 [shape = 'u8[262144]{0}', space=vmem, size = 0x40000, scoped, tag = 'input window, operand 1, single buffered']
    #allocation6 [shape = 's32[1]{0}', space=sflag, size = 0x4, scoped, tag = 'scoped memory for tpu_custom_call.1']
    #allocation7 [shape = 'u8[32768]{0}', space=vmem, size = 0x8000, scoped, tag = 'input window, operand 3, single buffered']
    #allocation8 [shape = 'u8[32768]{0}', space=vmem, size = 0x8000, scoped, tag = 'input window, operand 5, single buffered']
    #allocation9 [shape = 's32[1]{0}', space=sflag, size = 0x4, scoped, tag = 'scoped memory for tpu_custom_call.1']
    #allocation10 [shape = 'u8[32768]{0}', space=vmem, size = 0x8000, scoped, tag = 'input window, operand 7, single buffered']
    #allocation11 [shape = 'u8[2048]{0}', space=vmem, size = 0x800, scoped, tag = 'output window, operand 0, single buffered']
    %14 = vsyncpa [#allocation3], 0
    %15 = vsyncpa [#allocation6], 0
    %16 = vsyncpa [#allocation9], 0
    %17 = vsyncpa [#allocation4], 0
    // Predicated region
    $region2: #{tpu_custom_call.1} parent=1 // pred_check
      _
    $region3: #{tpu_custom_call.1} parent=1 // pred_check_branch
      %19 = sbr.rel (0) target = $region5
    $region4: #{tpu_custom_call.1} parent=1 // pred_region
      %s21 = ssub.s32 1024, 1024
      %22 = vsyncadd [#allocation3], %s21
      %s24 = sshll.u32 [#allocation2], 4
      %s25 = int_to_ptr.vmem [resolvable:$true] %s24
      %27 = dma.hbm_to_vmem [thread:$0]  %s0, 1024, %s25, [#allocation3]
    $region5: #{tpu_custom_call.1} parent=1 // pred_fallthru
      _
    // Predicated region
    $region6: #{tpu_custom_call.1} parent=1 // pred_check
      _
    $region7: #{tpu_custom_call.1} parent=1 // pred_check_branch
      %29 = sbr.rel (0) target = $region9
    $region8: #{tpu_custom_call.1} parent=1 // pred_region
      %s31 = ssub.s32 8192, 8192
      %32 = vsyncadd [#allocation6], %s31
      %s33 = sshll.u32 [#allocation5], 4
      %s34 = int_to_ptr.vmem [resolvable:$true] %s33
      %39 = dma.hbm_to_vmem [thread:$0]  %s1, 8192, %s34, [#allocation6], 64, 64, 4
    $region9: #{tpu_custom_call.1} parent=1 // pred_fallthru
      _
    // Predicated region
    $region10: #{tpu_custom_call.1} parent=1 // pred_check
      _
    $region11: #{tpu_custom_call.1} parent=1 // pred_check_branch
      %41 = sbr.rel (0) target = $region13
    $region12: #{tpu_custom_call.1} parent=1 // pred_region
      _
    $region13: #{tpu_custom_call.1} parent=1 // pred_fallthru
      _
    // Predicated region
    $region14: #{tpu_custom_call.1} parent=1 // pred_check
      _
    $region15: #{tpu_custom_call.1} parent=1 // pred_check_branch
      %43 = sbr.rel (0) target = $region17
    $region16: #{tpu_custom_call.1} parent=1 // pred_region
      %s45 = ssub.s32 1024, 1024
      %46 = vsyncadd [#allocation6], %s45
      %s47 = sshll.u32 [#allocation7], 4
      %s48 = int_to_ptr.vmem [resolvable:$true] %s47
      %53 = dma.hbm_to_vmem [thread:$0]  %s3, 1024, %s48, [#allocation6], 64, 64, 4
    $region17: #{tpu_custom_call.1} parent=1 // pred_fallthru
      _
    // Predicated region
    $region18: #{tpu_custom_call.1} parent=1 // pred_check
      _
    $region19: #{tpu_custom_call.1} parent=1 // pred_check_branch
      %55 = sbr.rel (0) target = $region21
    $region20: #{tpu_custom_call.1} parent=1 // pred_region
      _
    $region21: #{tpu_custom_call.1} parent=1 // pred_fallthru
      _
    // Predicated region
    $region22: #{tpu_custom_call.1} parent=1 // pred_check
      _
    $region23: #{tpu_custom_call.1} parent=1 // pred_check_branch
      %57 = sbr.rel (0) target = $region25
    $region24: #{tpu_custom_call.1} parent=1 // pred_region
      %s59 = ssub.s32 1024, 1024
      %60 = vsyncadd [#allocation9], %s59
      %s61 = sshll.u32 [#allocation8], 4
      %s62 = int_to_ptr.vmem [resolvable:$true] %s61
      %67 = dma.hbm_to_vmem [thread:$0]  %s5, 1024, %s62, [#allocation9], 64, 64, 4
    $region25: #{tpu_custom_call.1} parent=1 // pred_fallthru
      _
    // Predicated region
    $region26: #{tpu_custom_call.1} parent=1 // pred_check
      _
    $region27: #{tpu_custom_call.1} parent=1 // pred_check_branch
      %69 = sbr.rel (0) target = $region29
    $region28: #{tpu_custom_call.1} parent=1 // pred_region
      _
    $region29: #{tpu_custom_call.1} parent=1 // pred_fallthru
      _
    // Predicated region
    $region30: #{tpu_custom_call.1} parent=1 // pred_check
      _
    $region31: #{tpu_custom_call.1} parent=1 // pred_check_branch
      %71 = sbr.rel (0) target = $region33
    $region32: #{tpu_custom_call.1} parent=1 // pred_region
      %s73 = ssub.s32 1024, 1024
      %74 = vsyncadd [#allocation9], %s73
      %s75 = sshll.u32 [#allocation10], 4
      %s76 = int_to_ptr.vmem [resolvable:$true] %s75
      %81 = dma.hbm_to_vmem [thread:$0]  %s7, 1024, %s76, [#allocation9], 64, 64, 4
    $region33: #{tpu_custom_call.1} parent=1 // pred_fallthru
      _
    // Predicated region
    $region34: #{tpu_custom_call.1} parent=1 // pred_check
      _
    $region35: #{tpu_custom_call.1} parent=1 // pred_check_branch
      %83 = sbr.rel (0) target = $region37
    $region36: #{tpu_custom_call.1} parent=1 // pred_region
      _
    $region37: #{tpu_custom_call.1} parent=1 // pred_fallthru
      _
    // Predicated region
    $region38: #{tpu_custom_call.1} parent=1 // pred_check
      _
    $region39: #{tpu_custom_call.1} parent=1 // pred_check_branch
      %85 = sbr.rel (0) target = $region41
    $region40: #{tpu_custom_call.1} parent=1 // pred_region
      %86 = dma.done [#allocation3], 1024
    $region41: #{tpu_custom_call.1} parent=1 // pred_fallthru
      _
    // Predicated region
    $region42: #{tpu_custom_call.1} parent=1 // pred_check
      _
    $region43: #{tpu_custom_call.1} parent=1 // pred_check_branch
      %88 = sbr.rel (0) target = $region45
    $region44: #{tpu_custom_call.1} parent=1 // pred_region
      %89 = dma.done [#allocation6], 8192
    $region45: #{tpu_custom_call.1} parent=1 // pred_fallthru
      _
    // Predicated region
    $region46: #{tpu_custom_call.1} parent=1 // pred_check
      _
    $region47: #{tpu_custom_call.1} parent=1 // pred_check_branch
      %91 = sbr.rel (0) target = $region49
    $region48: #{tpu_custom_call.1} parent=1 // pred_region
      %92 = dma.done [#allocation6], 1024
    $region49: #{tpu_custom_call.1} parent=1 // pred_fallthru
      _
    // Predicated region
    $region50: #{tpu_custom_call.1} parent=1 // pred_check
      _
    $region51: #{tpu_custom_call.1} parent=1 // pred_check_branch
      %94 = sbr.rel (0) target = $region53
    $region52: #{tpu_custom_call.1} parent=1 // pred_region
      %95 = dma.done [#allocation9], 1024
    $region53: #{tpu_custom_call.1} parent=1 // pred_fallthru
      _
    // Predicated region
    $region54: #{tpu_custom_call.1} parent=1 // pred_check
      _
    $region55: #{tpu_custom_call.1} parent=1 // pred_check_branch
      %97 = sbr.rel (0) target = $region57
    $region56: #{tpu_custom_call.1} parent=1 // pred_region
      %98 = dma.done [#allocation9], 1024
    $region57: #{tpu_custom_call.1} parent=1 // pred_fallthru
      _
    %v100 = vld [vmem:[#allocation2] sm:$0xff]
    %v101 = vld [vmem:[#allocation2 + $0x8] sm:$0xff]
    %v102 = vld [vmem:[#allocation2 + $0x10] sm:$0xff]
    %v103 = vld [vmem:[#allocation2 + $0x18] sm:$0xff]
    %v104 = vld [vmem:[#allocation2 + $0x20] sm:$0xff]
    %v105 = vld [vmem:[#allocation2 + $0x28] sm:$0xff]
    %v106 = vld [vmem:[#allocation2 + $0x30] sm:$0xff]
    %v107 = vld [vmem:[#allocation2 + $0x38] sm:$0xff]
    %v108 = vpack.c.bf16 %v100, %v100
    %v109 = vpack.c.bf16 %v101, %v101
    %v110 = vpack.c.bf16 %v102, %v102
    %v111 = vpack.c.bf16 %v103, %v103
    %v112 = vpack.c.bf16 %v104, %v104
    %v113 = vpack.c.bf16 %v105, %v105
    %v114 = vpack.c.bf16 %v106, %v106
    %v115 = vpack.c.bf16 %v107, %v107
    %v116 = vld [vmem:[#allocation5] sm:$0xf]
    %v117 = vld [vmem:[#allocation5 + $0x4] sm:$0xf]
    %v118 = vld [vmem:[#allocation5 + $0x8] sm:$0xf]
    %v119 = vld [vmem:[#allocation5 + $0xc] sm:$0xf]
    %v120 = vld [vmem:[#allocation5 + $0x10] sm:$0xf]
    %v121 = vld [vmem:[#allocation5 + $0x14] sm:$0xf]
    %v122 = vld [vmem:[#allocation5 + $0x18] sm:$0xf]
    %v123 = vld [vmem:[#allocation5 + $0x1c] sm:$0xf]
    %v124 = vld [vmem:[#allocation5 + $0x20] sm:$0xf]
    %v125 = vld [vmem:[#allocation5 + $0x24] sm:$0xf]
    %v126 = vld [vmem:[#allocation5 + $0x28] sm:$0xf]
    %v127 = vld [vmem:[#allocation5 + $0x2c] sm:$0xf]
    %v128 = vld [vmem:[#allocation5 + $0x30] sm:$0xf]
    %v129 = vld [vmem:[#allocation5 + $0x34] sm:$0xf]
    %v130 = vld [vmem:[#allocation5 + $0x38] sm:$0xf]
    %v131 = vld [vmem:[#allocation5 + $0x3c] sm:$0xf]
    %v132 = vld [vmem:[#allocation5 + $0x40] sm:$0xf]
    %v133 = vld [vmem:[#allocation5 + $0x44] sm:$0xf]
    %v134 = vld [vmem:[#allocation5 + $0x48] sm:$0xf]
    %v135 = vld [vmem:[#allocation5 + $0x4c] sm:$0xf]
    %v136 = vld [vmem:[#allocation5 + $0x50] sm:$0xf]
    %v137 = vld [vmem:[#allocation5 + $0x54] sm:$0xf]
    %v138 = vld [vmem:[#allocation5 + $0x58] sm:$0xf]
    %v139 = vld [vmem:[#allocation5 + $0x5c] sm:$0xf]
    %v140 = vld [vmem:[#allocation5 + $0x60] sm:$0xf]
    %v141 = vld [vmem:[#allocation5 + $0x64] sm:$0xf]
    %v142 = vld [vmem:[#allocation5 + $0x68] sm:$0xf]
    %v143 = vld [vmem:[#allocation5 + $0x6c] sm:$0xf]
    %v144 = vld [vmem:[#allocation5 + $0x70] sm:$0xf]
    %v145 = vld [vmem:[#allocation5 + $0x74] sm:$0xf]
    %v146 = vld [vmem:[#allocation5 + $0x78] sm:$0xf]
    %v147 = vld [vmem:[#allocation5 + $0x7c] sm:$0xf]
    %v148 = vld [vmem:[#allocation5 + $0x80] sm:$0xf]
    %v149 = vld [vmem:[#allocation5 + $0x84] sm:$0xf]
    %v150 = vld [vmem:[#allocation5 + $0x88] sm:$0xf]
    %v151 = vld [vmem:[#allocation5 + $0x8c] sm:$0xf]
    %v152 = vld [vmem:[#allocation5 + $0x90] sm:$0xf]
    %v153 = vld [vmem:[#allocation5 + $0x94] sm:$0xf]
    %v154 = vld [vmem:[#allocation5 + $0x98] sm:$0xf]
    %v155 = vld [vmem:[#allocation5 + $0x9c] sm:$0xf]
    %v156 = vld [vmem:[#allocation5 + $0xa0] sm:$0xf]
    %v157 = vld [vmem:[#allocation5 + $0xa4] sm:$0xf]
    %v158 = vld [vmem:[#allocation5 + $0xa8] sm:$0xf]
    %v159 = vld [vmem:[#allocation5 + $0xac] sm:$0xf]
    %v160 = vld [vmem:[#allocation5 + $0xb0] sm:$0xf]
    %v161 = vld [vmem:[#allocation5 + $0xb4] sm:$0xf]
    %v162 = vld [vmem:[#allocation5 + $0xb8] sm:$0xf]
    %v163 = vld [vmem:[#allocation5 + $0xbc] sm:$0xf]
    %v164 = vld [vmem:[#allocation5 + $0xc0] sm:$0xf]
    %v165 = vld [vmem:[#allocation5 + $0xc4] sm:$0xf]
    %v166 = vld [vmem:[#allocation5 + $0xc8] sm:$0xf]
    %v167 = vld [vmem:[#allocation5 + $0xcc] sm:$0xf]
    %v168 = vld [vmem:[#allocation5 + $0xd0] sm:$0xf]
    %v169 = vld [vmem:[#allocation5 + $0xd4] sm:$0xf]
    %v170 = vld [vmem:[#allocation5 + $0xd8] sm:$0xf]
    %v171 = vld [vmem:[#allocation5 + $0xdc] sm:$0xf]
    %v172 = vld [vmem:[#allocation5 + $0xe0] sm:$0xf]
    %v173 = vld [vmem:[#allocation5 + $0xe4] sm:$0xf]
    %v174 = vld [vmem:[#allocation5 + $0xe8] sm:$0xf]
    %v175 = vld [vmem:[#allocation5 + $0xec] sm:$0xf]
    %v176 = vld [vmem:[#allocation5 + $0xf0] sm:$0xf]
    %v177 = vld [vmem:[#allocation5 + $0xf4] sm:$0xf]
    %v178 = vld [vmem:[#allocation5 + $0xf8] sm:$0xf]
    %v179 = vld [vmem:[#allocation5 + $0xfc] sm:$0xf]
    %v180 = vld [vmem:[#allocation5 + $0x100] sm:$0xf]
    %v181 = vld [vmem:[#allocation5 + $0x104] sm:$0xf]
    %v182 = vld [vmem:[#allocation5 + $0x108] sm:$0xf]
    %v183 = vld [vmem:[#allocation5 + $0x10c] sm:$0xf]
    %v184 = vld [vmem:[#allocation5 + $0x110] sm:$0xf]
    %v185 = vld [vmem:[#allocation5 + $0x114] sm:$0xf]
    %v186 = vld [vmem:[#allocation5 + $0x118] sm:$0xf]
    %v187 = vld [vmem:[#allocation5 + $0x11c] sm:$0xf]
    %v188 = vld [vmem:[#allocation5 + $0x120] sm:$0xf]
    %v189 = vld [vmem:[#allocation5 + $0x124] sm:$0xf]
    %v190 = vld [vmem:[#allocation5 + $0x128] sm:$0xf]
    %v191 = vld [vmem:[#allocation5 + $0x12c] sm:$0xf]
    %v192 = vld [vmem:[#allocation5 + $0x130] sm:$0xf]
    %v193 = vld [vmem:[#allocation5 + $0x134] sm:$0xf]
    %v194 = vld [vmem:[#allocation5 + $0x138] sm:$0xf]
    %v195 = vld [vmem:[#allocation5 + $0x13c] sm:$0xf]
    %v196 = vld [vmem:[#allocation5 + $0x140] sm:$0xf]
    %v197 = vld [vmem:[#allocation5 + $0x144] sm:$0xf]
    %v198 = vld [vmem:[#allocation5 + $0x148] sm:$0xf]
    %v199 = vld [vmem:[#allocation5 + $0x14c] sm:$0xf]
    %v200 = vld [vmem:[#allocation5 + $0x150] sm:$0xf]
    %v201 = vld [vmem:[#allocation5 + $0x154] sm:$0xf]
    %v202 = vld [vmem:[#allocation5 + $0x158] sm:$0xf]
    %v203 = vld [vmem:[#allocation5 + $0x15c] sm:$0xf]
    %v204 = vld [vmem:[#allocation5 + $0x160] sm:$0xf]
    %v205 = vld [vmem:[#allocation5 + $0x164] sm:$0xf]
    %v206 = vld [vmem:[#allocation5 + $0x168] sm:$0xf]
    %v207 = vld [vmem:[#allocation5 + $0x16c] sm:$0xf]
    %v208 = vld [vmem:[#allocation5 + $0x170] sm:$0xf]
    %v209 = vld [vmem:[#allocation5 + $0x174] sm:$0xf]
    %v210 = vld [vmem:[#allocation5 + $0x178] sm:$0xf]
    %v211 = vld [vmem:[#allocation5 + $0x17c] sm:$0xf]
    %v212 = vld [vmem:[#allocation5 + $0x180] sm:$0xf]
    %v213 = vld [vmem:[#allocation5 + $0x184] sm:$0xf]
    %v214 = vld [vmem:[#allocation5 + $0x188] sm:$0xf]
    %v215 = vld [vmem:[#allocation5 + $0x18c] sm:$0xf]
    %v216 = vld [vmem:[#allocation5 + $0x190] sm:$0xf]
    %v217 = vld [vmem:[#allocation5 + $0x194] sm:$0xf]
    %v218 = vld [vmem:[#allocation5 + $0x198] sm:$0xf]
    %v219 = vld [vmem:[#allocation5 + $0x19c] sm:$0xf]
    %v220 = vld [vmem:[#allocation5 + $0x1a0] sm:$0xf]
    %v221 = vld [vmem:[#allocation5 + $0x1a4] sm:$0xf]
    %v222 = vld [vmem:[#allocation5 + $0x1a8] sm:$0xf]
    %v223 = vld [vmem:[#allocation5 + $0x1ac] sm:$0xf]
    %v224 = vld [vmem:[#allocation5 + $0x1b0] sm:$0xf]
    %v225 = vld [vmem:[#allocation5 + $0x1b4] sm:$0xf]
    %v226 = vld [vmem:[#allocation5 + $0x1b8] sm:$0xf]
    %v227 = vld [vmem:[#allocation5 + $0x1bc] sm:$0xf]
    %v228 = vld [vmem:[#allocation5 + $0x1c0] sm:$0xf]
    %v229 = vld [vmem:[#allocation5 + $0x1c4] sm:$0xf]
    %v230 = vld [vmem:[#allocation5 + $0x1c8] sm:$0xf]
    %v231 = vld [vmem:[#allocation5 + $0x1cc] sm:$0xf]
    %v232 = vld [vmem:[#allocation5 + $0x1d0] sm:$0xf]
    %v233 = vld [vmem:[#allocation5 + $0x1d4] sm:$0xf]
    %v234 = vld [vmem:[#allocation5 + $0x1d8] sm:$0xf]
    %v235 = vld [vmem:[#allocation5 + $0x1dc] sm:$0xf]
    %v236 = vld [vmem:[#allocation5 + $0x1e0] sm:$0xf]
    %v237 = vld [vmem:[#allocation5 + $0x1e4] sm:$0xf]
    %v238 = vld [vmem:[#allocation5 + $0x1e8] sm:$0xf]
    %v239 = vld [vmem:[#allocation5 + $0x1ec] sm:$0xf]
    %v240 = vld [vmem:[#allocation5 + $0x1f0] sm:$0xf]
    %v241 = vld [vmem:[#allocation5 + $0x1f4] sm:$0xf]
    %v242 = vld [vmem:[#allocation5 + $0x1f8] sm:$0xf]
    %v243 = vld [vmem:[#allocation5 + $0x1fc] sm:$0xf]
    %v244 = vld [vmem:[%s2] sm:$0x1]
    %v246 = vlaneseq
    %v247 = vshrl.u32 %v246, 7
    %v248 = vsub.s32 0, %v247
    %v249 = vrot.slane %v244, %v248
    %v379 = vunpack.c.l.b16 %v116
    %v380 = vunpack.c.l.b16 %v117
    %v381 = vunpack.c.l.b16 %v118
    %v382 = vunpack.c.l.b16 %v119
    %v383 = vunpack.c.l.b16 %v120
    %v384 = vunpack.c.l.b16 %v121
    %v385 = vunpack.c.l.b16 %v122
    %v386 = vunpack.c.l.b16 %v123
    %v387 = vunpack.c.l.b16 %v124
    %v388 = vunpack.c.l.b16 %v125
    %v389 = vunpack.c.l.b16 %v126
    %v390 = vunpack.c.l.b16 %v127
    %v391 = vunpack.c.l.b16 %v128
    %v392 = vunpack.c.l.b16 %v129
    %v393 = vunpack.c.l.b16 %v130
    %v394 = vunpack.c.l.b16 %v131
    %v395 = vunpack.c.l.b16 %v132
    %v396 = vunpack.c.l.b16 %v133
    %v397 = vunpack.c.l.b16 %v134
    %v398 = vunpack.c.l.b16 %v135
    %v399 = vunpack.c.l.b16 %v136
    %v400 = vunpack.c.l.b16 %v137
    %v401 = vunpack.c.l.b16 %v138
    %v402 = vunpack.c.l.b16 %v139
    %v403 = vunpack.c.l.b16 %v140
    %v404 = vunpack.c.l.b16 %v141
    %v405 = vunpack.c.l.b16 %v142
    %v406 = vunpack.c.l.b16 %v143
    %v407 = vunpack.c.l.b16 %v144
    %v408 = vunpack.c.l.b16 %v145
    %v409 = vunpack.c.l.b16 %v146
    %v410 = vunpack.c.l.b16 %v147
    %v411 = vunpack.c.l.b16 %v148
    %v412 = vunpack.c.l.b16 %v149
    %v413 = vunpack.c.l.b16 %v150
    %v414 = vunpack.c.l.b16 %v151
    %v415 = vunpack.c.l.b16 %v152
    %v416 = vunpack.c.l.b16 %v153
    %v417 = vunpack.c.l.b16 %v154
    %v418 = vunpack.c.l.b16 %v155
    %v419 = vunpack.c.l.b16 %v156
    %v420 = vunpack.c.l.b16 %v157
    %v421 = vunpack.c.l.b16 %v158
    %v422 = vunpack.c.l.b16 %v159
    %v423 = vunpack.c.l.b16 %v160
    %v424 = vunpack.c.l.b16 %v161
    %v425 = vunpack.c.l.b16 %v162
    %v426 = vunpack.c.l.b16 %v163
    %v427 = vunpack.c.l.b16 %v164
    %v428 = vunpack.c.l.b16 %v165
    %v429 = vunpack.c.l.b16 %v166
    %v430 = vunpack.c.l.b16 %v167
    %v431 = vunpack.c.l.b16 %v168
    %v432 = vunpack.c.l.b16 %v169
    %v433 = vunpack.c.l.b16 %v170
    %v434 = vunpack.c.l.b16 %v171
    %v435 = vunpack.c.l.b16 %v172
    %v436 = vunpack.c.l.b16 %v173
    %v437 = vunpack.c.l.b16 %v174
    %v438 = vunpack.c.l.b16 %v175
    %v439 = vunpack.c.l.b16 %v176
    %v440 = vunpack.c.l.b16 %v177
    %v441 = vunpack.c.l.b16 %v178
    %v442 = vunpack.c.l.b16 %v179
    %v443 = vunpack.c.l.b16 %v180
    %v444 = vunpack.c.l.b16 %v181
    %v445 = vunpack.c.l.b16 %v182
    %v446 = vunpack.c.l.b16 %v183
    %v447 = vunpack.c.l.b16 %v184
    %v448 = vunpack.c.l.b16 %v185
    %v449 = vunpack.c.l.b16 %v186
    %v450 = vunpack.c.l.b16 %v187
    %v451 = vunpack.c.l.b16 %v188
    %v452 = vunpack.c.l.b16 %v189
    %v453 = vunpack.c.l.b16 %v190
    %v454 = vunpack.c.l.b16 %v191
    %v455 = vunpack.c.l.b16 %v192
    %v456 = vunpack.c.l.b16 %v193
    %v457 = vunpack.c.l.b16 %v194
    %v458 = vunpack.c.l.b16 %v195
    %v459 = vunpack.c.l.b16 %v196
    %v460 = vunpack.c.l.b16 %v197
    %v461 = vunpack.c.l.b16 %v198
    %v462 = vunpack.c.l.b16 %v199
    %v463 = vunpack.c.l.b16 %v200
    %v464 = vunpack.c.l.b16 %v201
    %v465 = vunpack.c.l.b16 %v202
    %v466 = vunpack.c.l.b16 %v203
    %v467 = vunpack.c.l.b16 %v204
    %v468 = vunpack.c.l.b16 %v205
    %v469 = vunpack.c.l.b16 %v206
    %v470 = vunpack.c.l.b16 %v207
    %v471 = vunpack.c.l.b16 %v208
    %v472 = vunpack.c.l.b16 %v209
    %v473 = vunpack.c.l.b16 %v210
    %v474 = vunpack.c.l.b16 %v211
    %v475 = vunpack.c.l.b16 %v212
    %v476 = vunpack.c.l.b16 %v213
    %v477 = vunpack.c.l.b16 %v214
    %v478 = vunpack.c.l.b16 %v215
    %v479 = vunpack.c.l.b16 %v216
    %v480 = vunpack.c.l.b16 %v217
    %v481 = vunpack.c.l.b16 %v218
    %v482 = vunpack.c.l.b16 %v219
    %v483 = vunpack.c.l.b16 %v220
    %v484 = vunpack.c.l.b16 %v221
    %v485 = vunpack.c.l.b16 %v222
    %v486 = vunpack.c.l.b16 %v223
    %v487 = vunpack.c.l.b16 %v224
    %v488 = vunpack.c.l.b16 %v225
    %v489 = vunpack.c.l.b16 %v226
    %v490 = vunpack.c.l.b16 %v227
    %v491 = vunpack.c.l.b16 %v228
    %v492 = vunpack.c.l.b16 %v229
    %v493 = vunpack.c.l.b16 %v230
    %v494 = vunpack.c.l.b16 %v231
    %v495 = vunpack.c.l.b16 %v232
    %v496 = vunpack.c.l.b16 %v233
    %v497 = vunpack.c.l.b16 %v234
    %v498 = vunpack.c.l.b16 %v235
    %v499 = vunpack.c.l.b16 %v236
    %v500 = vunpack.c.l.b16 %v237
    %v501 = vunpack.c.l.b16 %v238
    %v502 = vunpack.c.l.b16 %v239
    %v503 = vunpack.c.l.b16 %v240
    %v504 = vunpack.c.l.b16 %v241
    %v505 = vunpack.c.l.b16 %v242
    %v506 = vunpack.c.l.b16 %v243
    %v507 = vpack.c.b16 %v380, %v379
    %v508 = vpack.c.b16 %v382, %v381
    %v509 = vpack.c.b16 %v384, %v383
    %v510 = vpack.c.b16 %v386, %v385
    %v511 = vpack.c.b16 %v388, %v387
    %v512 = vpack.c.b16 %v390, %v389
    %v513 = vpack.c.b16 %v392, %v391
    %v514 = vpack.c.b16 %v394, %v393
    %v515 = vpack.c.b16 %v396, %v395
    %v516 = vpack.c.b16 %v398, %v397
    %v517 = vpack.c.b16 %v400, %v399
    %v518 = vpack.c.b16 %v402, %v401
    %v519 = vpack.c.b16 %v404, %v403
    %v520 = vpack.c.b16 %v406, %v405
    %v521 = vpack.c.b16 %v408, %v407
    %v522 = vpack.c.b16 %v410, %v409
    %v523 = vpack.c.b16 %v412, %v411
    %v524 = vpack.c.b16 %v414, %v413
    %v525 = vpack.c.b16 %v416, %v415
    %v526 = vpack.c.b16 %v418, %v417
    %v527 = vpack.c.b16 %v420, %v419
    %v528 = vpack.c.b16 %v422, %v421
    %v529 = vpack.c.b16 %v424, %v423
    %v530 = vpack.c.b16 %v426, %v425
    %v531 = vpack.c.b16 %v428, %v427
    %v532 = vpack.c.b16 %v430, %v429
    %v533 = vpack.c.b16 %v432, %v431
    %v534 = vpack.c.b16 %v434, %v433
    %v535 = vpack.c.b16 %v436, %v435
    %v536 = vpack.c.b16 %v438, %v437
    %v537 = vpack.c.b16 %v440, %v439
    %v538 = vpack.c.b16 %v442, %v441
    %v539 = vpack.c.b16 %v444, %v443
    %v540 = vpack.c.b16 %v446, %v445
    %v541 = vpack.c.b16 %v448, %v447
    %v542 = vpack.c.b16 %v450, %v449
    %v543 = vpack.c.b16 %v452, %v451
    %v544 = vpack.c.b16 %v454, %v453
    %v545 = vpack.c.b16 %v456, %v455
    %v546 = vpack.c.b16 %v458, %v457
    %v547 = vpack.c.b16 %v460, %v459
    %v548 = vpack.c.b16 %v462, %v461
    %v549 = vpack.c.b16 %v464, %v463
    %v550 = vpack.c.b16 %v466, %v465
    %v551 = vpack.c.b16 %v468, %v467
    %v552 = vpack.c.b16 %v470, %v469
    %v553 = vpack.c.b16 %v472, %v471
    %v554 = vpack.c.b16 %v474, %v473
    %v555 = vpack.c.b16 %v476, %v475
    %v556 = vpack.c.b16 %v478, %v477
    %v557 = vpack.c.b16 %v480, %v479
    %v558 = vpack.c.b16 %v482, %v481
    %v559 = vpack.c.b16 %v484, %v483
    %v560 = vpack.c.b16 %v486, %v485
    %v561 = vpack.c.b16 %v488, %v487
    %v562 = vpack.c.b16 %v490, %v489
    %v563 = vpack.c.b16 %v492, %v491
    %v564 = vpack.c.b16 %v494, %v493
    %v565 = vpack.c.b16 %v496, %v495
    %v566 = vpack.c.b16 %v498, %v497
    %v567 = vpack.c.b16 %v500, %v499
    %v568 = vpack.c.b16 %v502, %v501
    %v569 = vpack.c.b16 %v504, %v503
    %v570 = vpack.c.b16 %v506, %v505
    %635 = vmatprep.subr.bf16.mxu0 0
    %636 = vmatpush1.bf16.msra.mxu0 %v514
    %637 = vmatprep.subr.bf16.mxu0 0
    %638 = vmatpush1.bf16.msra.mxu0 %v513
    %639 = vmatprep.subr.bf16.mxu0 0
    %640 = vmatpush1.bf16.msra.mxu0 %v512
    %641 = vmatprep.subr.bf16.mxu0 0
    %642 = vmatpush1.bf16.msra.mxu0 %v511
    %643 = vmatprep.subr.bf16.mxu0 0
    %644 = vmatpush1.bf16.msra.mxu0 %v510
    %645 = vmatprep.subr.bf16.mxu0 0
    %646 = vmatpush1.bf16.msra.mxu0 %v509
    %647 = vmatprep.subr.bf16.mxu0 0
    %648 = vmatpush1.bf16.msra.mxu0 %v508
    %649 = vmatprep.subr.bf16.mxu0 0
    %650 = vmatpush1.bf16.msra.mxu0 %v507
    %651 = vmatprep.subr.bf16.mxu0 0
    %652 = vmatpush2.bf16.msra.mxu0 %v522
    %653 = vmatprep.subr.bf16.mxu0 0
    %654 = vmatpush2.bf16.msra.mxu0 %v521
    %655 = vmatprep.subr.bf16.mxu0 0
    %656 = vmatpush2.bf16.msra.mxu0 %v520
    %657 = vmatprep.subr.bf16.mxu0 0
    %658 = vmatpush2.bf16.msra.mxu0 %v519
    %659 = vmatprep.subr.bf16.mxu0 0
    %660 = vmatpush2.bf16.msra.mxu0 %v518
    %661 = vmatprep.subr.bf16.mxu0 0
    %662 = vmatpush2.bf16.msra.mxu0 %v517
    %663 = vmatprep.subr.bf16.mxu0 0
    %664 = vmatpush2.bf16.msra.mxu0 %v516
    %665 = vmatprep.subr.bf16.mxu0 0
    %666 = vmatpush2.bf16.msra.mxu0 %v515
    %667 = vmatprep.mubr.bf16.mxu0 %v109
    %668 = vmatmul.mubr.bf16.gmra.mxu0 %v108
    %v669 = vpop.f32.mrf.mxu0
    %v670 = vadd.f32 %v249, %v669
    %v671 = vpop.f32.mrf.mxu0
    %v672 = vpop.f32.mrf.mxu0
    %v673 = vpop.f32.mrf.mxu0
    %674 = vdwg.mxu0
    %675 = vmatprep.subr.bf16.mxu0 0
    %676 = vmatpush1.bf16.msra.mxu0 %v530
    %677 = vmatprep.subr.bf16.mxu0 0
    %678 = vmatpush1.bf16.msra.mxu0 %v529
    %679 = vmatprep.subr.bf16.mxu0 0
    %680 = vmatpush1.bf16.msra.mxu0 %v528
    %681 = vmatprep.subr.bf16.mxu0 0
    %682 = vmatpush1.bf16.msra.mxu0 %v527
    %683 = vmatprep.subr.bf16.mxu0 0
    %684 = vmatpush1.bf16.msra.mxu0 %v526
    %685 = vmatprep.subr.bf16.mxu0 0
    %686 = vmatpush1.bf16.msra.mxu0 %v525
    %687 = vmatprep.subr.bf16.mxu0 0
    %688 = vmatpush1.bf16.msra.mxu0 %v524
    %689 = vmatprep.subr.bf16.mxu0 0
    %690 = vmatpush1.bf16.msra.mxu0 %v523
    %691 = vmatprep.subr.bf16.mxu0 0
    %692 = vmatpush2.bf16.msra.mxu0 %v538
    %693 = vmatprep.subr.bf16.mxu0 0
    %694 = vmatpush2.bf16.msra.mxu0 %v537
    %695 = vmatprep.subr.bf16.mxu0 0
    %696 = vmatpush2.bf16.msra.mxu0 %v536
    %697 = vmatprep.subr.bf16.mxu0 0
    %698 = vmatpush2.bf16.msra.mxu0 %v535
    %699 = vmatprep.subr.bf16.mxu0 0
    %700 = vmatpush2.bf16.msra.mxu0 %v534
    %701 = vmatprep.subr.bf16.mxu0 0
    %702 = vmatpush2.bf16.msra.mxu0 %v533
    %703 = vmatprep.subr.bf16.mxu0 0
    %704 = vmatpush2.bf16.msra.mxu0 %v532
    %705 = vmatprep.subr.bf16.mxu0 0
    %706 = vmatpush2.bf16.msra.mxu0 %v531
    %707 = vmatprep.mubr.bf16.mxu0 %v111
    %708 = vmatmul.mubr.bf16.gmra.mxu0 %v110
    %v709 = vpop.f32.mrf.mxu0
    %v710 = vadd.f32 %v670, %v709
    %v711 = vpop.f32.mrf.mxu0
    %v712 = vpop.f32.mrf.mxu0
    %v713 = vpop.f32.mrf.mxu0
    %714 = vdwg.mxu0
    %715 = vmatprep.subr.bf16.mxu0 0
    %716 = vmatpush1.bf16.msra.mxu0 %v546
    %717 = vmatprep.subr.bf16.mxu0 0
    %718 = vmatpush1.bf16.msra.mxu0 %v545
    %719 = vmatprep.subr.bf16.mxu0 0
    %720 = vmatpush1.bf16.msra.mxu0 %v544
    %721 = vmatprep.subr.bf16.mxu0 0
    %722 = vmatpush1.bf16.msra.mxu0 %v543
    %723 = vmatprep.subr.bf16.mxu0 0
    %724 = vmatpush1.bf16.msra.mxu0 %v542
    %725 = vmatprep.subr.bf16.mxu0 0
    %726 = vmatpush1.bf16.msra.mxu0 %v541
    %727 = vmatprep.subr.bf16.mxu0 0
    %728 = vmatpush1.bf16.msra.mxu0 %v540
    %729 = vmatprep.subr.bf16.mxu0 0
    %730 = vmatpush1.bf16.msra.mxu0 %v539
    %731 = vmatprep.subr.bf16.mxu0 0
    %732 = vmatpush2.bf16.msra.mxu0 %v554
    %733 = vmatprep.subr.bf16.mxu0 0
    %734 = vmatpush2.bf16.msra.mxu0 %v553
    %735 = vmatprep.subr.bf16.mxu0 0
    %736 = vmatpush2.bf16.msra.mxu0 %v552
    %737 = vmatprep.subr.bf16.mxu0 0
    %738 = vmatpush2.bf16.msra.mxu0 %v551
    %739 = vmatprep.subr.bf16.mxu0 0
    %740 = vmatpush2.bf16.msra.mxu0 %v550
    %741 = vmatprep.subr.bf16.mxu0 0
    %742 = vmatpush2.bf16.msra.mxu0 %v549
    %743 = vmatprep.subr.bf16.mxu0 0
    %744 = vmatpush2.bf16.msra.mxu0 %v548
    %745 = vmatprep.subr.bf16.mxu0 0
    %746 = vmatpush2.bf16.msra.mxu0 %v547
    %747 = vmatprep.mubr.bf16.mxu0 %v113
    %748 = vmatmul.mubr.bf16.gmra.mxu0 %v112
    %v749 = vpop.f32.mrf.mxu0
    %v750 = vadd.f32 %v710, %v749
    %v751 = vpop.f32.mrf.mxu0
    %v752 = vpop.f32.mrf.mxu0
    %v753 = vpop.f32.mrf.mxu0
    %754 = vdwg.mxu0
    %755 = vmatprep.subr.bf16.mxu0 0
    %756 = vmatpush1.bf16.msra.mxu0 %v562
    %757 = vmatprep.subr.bf16.mxu0 0
    %758 = vmatpush1.bf16.msra.mxu0 %v561
    %759 = vmatprep.subr.bf16.mxu0 0
    %760 = vmatpush1.bf16.msra.mxu0 %v560
    %761 = vmatprep.subr.bf16.mxu0 0
    %762 = vmatpush1.bf16.msra.mxu0 %v559
    %763 = vmatprep.subr.bf16.mxu0 0
    %764 = vmatpush1.bf16.msra.mxu0 %v558
    %765 = vmatprep.subr.bf16.mxu0 0
    %766 = vmatpush1.bf16.msra.mxu0 %v557
    %767 = vmatprep.subr.bf16.mxu0 0
    %768 = vmatpush1.bf16.msra.mxu0 %v556
    %769 = vmatprep.subr.bf16.mxu0 0
    %770 = vmatpush1.bf16.msra.mxu0 %v555
    %771 = vmatprep.subr.bf16.mxu0 0
    %772 = vmatpush2.bf16.msra.mxu0 %v570
    %773 = vmatprep.subr.bf16.mxu0 0
    %774 = vmatpush2.bf16.msra.mxu0 %v569
    %775 = vmatprep.subr.bf16.mxu0 0
    %776 = vmatpush2.bf16.msra.mxu0 %v568
    %777 = vmatprep.subr.bf16.mxu0 0
    %778 = vmatpush2.bf16.msra.mxu0 %v567
    %779 = vmatprep.subr.bf16.mxu0 0
    %780 = vmatpush2.bf16.msra.mxu0 %v566
    %781 = vmatprep.subr.bf16.mxu0 0
    %782 = vmatpush2.bf16.msra.mxu0 %v565
    %783 = vmatprep.subr.bf16.mxu0 0
    %784 = vmatpush2.bf16.msra.mxu0 %v564
    %785 = vmatprep.subr.bf16.mxu0 0
    %786 = vmatpush2.bf16.msra.mxu0 %v563
    %787 = vmatprep.mubr.bf16.mxu0 %v115
    %788 = vmatmul.mubr.bf16.gmra.mxu0 %v114
    %v789 = vpop.f32.mrf.mxu0
    %v790 = vadd.f32 %v750, %v789
    %v791 = vpop.f32.mrf.mxu0
    %v792 = vpop.f32.mrf.mxu0
    %v793 = vpop.f32.mrf.mxu0
    %794 = vdwg.mxu0
    %v795 = vmax.f32 %v790, 0.0
    %v796 = vpack.c.bf16 %v795, %v795
    %v797 = vld [vmem:[#allocation7] sm:$0xf]
    %v798 = vld [vmem:[#allocation7 + $0x4] sm:$0xf]
    %v799 = vld [vmem:[#allocation7 + $0x8] sm:$0xf]
    %v800 = vld [vmem:[#allocation7 + $0xc] sm:$0xf]
    %v801 = vld [vmem:[#allocation7 + $0x10] sm:$0xf]
    %v802 = vld [vmem:[#allocation7 + $0x14] sm:$0xf]
    %v803 = vld [vmem:[#allocation7 + $0x18] sm:$0xf]
    %v804 = vld [vmem:[#allocation7 + $0x1c] sm:$0xf]
    %v805 = vld [vmem:[#allocation7 + $0x20] sm:$0xf]
    %v806 = vld [vmem:[#allocation7 + $0x24] sm:$0xf]
    %v807 = vld [vmem:[#allocation7 + $0x28] sm:$0xf]
    %v808 = vld [vmem:[#allocation7 + $0x2c] sm:$0xf]
    %v809 = vld [vmem:[#allocation7 + $0x30] sm:$0xf]
    %v810 = vld [vmem:[#allocation7 + $0x34] sm:$0xf]
    %v811 = vld [vmem:[#allocation7 + $0x38] sm:$0xf]
    %v812 = vld [vmem:[#allocation7 + $0x3c] sm:$0xf]
    %v813 = vld [vmem:[%s4] sm:$0x1]
    %v815 = vlaneseq
    %v816 = vshrl.u32 %v815, 7
    %v817 = vsub.s32 0, %v816
    %v818 = vrot.slane %v813, %v817
    %v836 = vunpack.c.l.b16 %v797
    %v837 = vunpack.c.l.b16 %v798
    %v838 = vunpack.c.l.b16 %v799
    %v839 = vunpack.c.l.b16 %v800
    %v840 = vunpack.c.l.b16 %v801
    %v841 = vunpack.c.l.b16 %v802
    %v842 = vunpack.c.l.b16 %v803
    %v843 = vunpack.c.l.b16 %v804
    %v844 = vunpack.c.l.b16 %v805
    %v845 = vunpack.c.l.b16 %v806
    %v846 = vunpack.c.l.b16 %v807
    %v847 = vunpack.c.l.b16 %v808
    %v848 = vunpack.c.l.b16 %v809
    %v849 = vunpack.c.l.b16 %v810
    %v850 = vunpack.c.l.b16 %v811
    %v851 = vunpack.c.l.b16 %v812
    %v852 = vpack.c.b16 %v837, %v836
    %v853 = vpack.c.b16 %v839, %v838
    %v854 = vpack.c.b16 %v841, %v840
    %v855 = vpack.c.b16 %v843, %v842
    %v856 = vpack.c.b16 %v845, %v844
    %v857 = vpack.c.b16 %v847, %v846
    %v858 = vpack.c.b16 %v849, %v848
    %v859 = vpack.c.b16 %v851, %v850
    %868 = vmatprep.subr.bf16.mxu0 0
    %869 = vmatpush1.bf16.msra.mxu0 %v859
    %870 = vmatprep.subr.bf16.mxu0 0
    %871 = vmatpush1.bf16.msra.mxu0 %v858
    %872 = vmatprep.subr.bf16.mxu0 0
    %873 = vmatpush1.bf16.msra.mxu0 %v857
    %874 = vmatprep.subr.bf16.mxu0 0
    %875 = vmatpush1.bf16.msra.mxu0 %v856
    %876 = vmatprep.subr.bf16.mxu0 0
    %877 = vmatpush1.bf16.msra.mxu0 %v855
    %878 = vmatprep.subr.bf16.mxu0 0
    %879 = vmatpush1.bf16.msra.mxu0 %v854
    %880 = vmatprep.subr.bf16.mxu0 0
    %881 = vmatpush1.bf16.msra.mxu0 %v853
    %882 = vmatprep.subr.bf16.mxu0 0
    %883 = vmatpush1.bf16.msra.mxu0 %v852
    %884 = vmatprep.subr.bf16.mxu0 0
    %885 = vmatpush2.bf16.msra.mxu0 0
    %886 = vmatprep.subr.bf16.mxu0 0
    %887 = vmatpush2.bf16.msra.mxu0 0
    %888 = vmatprep.subr.bf16.mxu0 0
    %889 = vmatpush2.bf16.msra.mxu0 0
    %890 = vmatprep.subr.bf16.mxu0 0
    %891 = vmatpush2.bf16.msra.mxu0 0
    %892 = vmatprep.subr.bf16.mxu0 0
    %893 = vmatpush2.bf16.msra.mxu0 0
    %894 = vmatprep.subr.bf16.mxu0 0
    %895 = vmatpush2.bf16.msra.mxu0 0
    %896 = vmatprep.subr.bf16.mxu0 0
    %897 = vmatpush2.bf16.msra.mxu0 0
    %898 = vmatprep.subr.bf16.mxu0 0
    %899 = vmatpush2.bf16.msra.mxu0 0
    %900 = vmatprep.mubr.bf16.mxu0 0
    %901 = vmatmul.mubr.bf16.gmra.mxu0 %v796
    %v902 = vpop.f32.mrf.mxu0
    %v903 = vadd.f32 %v818, %v902
    %v904 = vpop.f32.mrf.mxu0
    %v905 = vpop.f32.mrf.mxu0
    %v906 = vpop.f32.mrf.mxu0
    %907 = vdwg.mxu0
    %v908 = vmax.f32 %v903, 0.0
    %v909 = vpack.c.bf16 %v908, %v908
    %v910 = vld [vmem:[#allocation8] sm:$0xf]
    %v911 = vld [vmem:[#allocation8 + $0x4] sm:$0xf]
    %v912 = vld [vmem:[#allocation8 + $0x8] sm:$0xf]
    %v913 = vld [vmem:[#allocation8 + $0xc] sm:$0xf]
    %v914 = vld [vmem:[#allocation8 + $0x10] sm:$0xf]
    %v915 = vld [vmem:[#allocation8 + $0x14] sm:$0xf]
    %v916 = vld [vmem:[#allocation8 + $0x18] sm:$0xf]
    %v917 = vld [vmem:[#allocation8 + $0x1c] sm:$0xf]
    %v918 = vld [vmem:[#allocation8 + $0x20] sm:$0xf]
    %v919 = vld [vmem:[#allocation8 + $0x24] sm:$0xf]
    %v920 = vld [vmem:[#allocation8 + $0x28] sm:$0xf]
    %v921 = vld [vmem:[#allocation8 + $0x2c] sm:$0xf]
    %v922 = vld [vmem:[#allocation8 + $0x30] sm:$0xf]
    %v923 = vld [vmem:[#allocation8 + $0x34] sm:$0xf]
    %v924 = vld [vmem:[#allocation8 + $0x38] sm:$0xf]
    %v925 = vld [vmem:[#allocation8 + $0x3c] sm:$0xf]
    %v926 = vld [vmem:[%s6] sm:$0x1]
    %v928 = vlaneseq
    %v929 = vshrl.u32 %v928, 7
    %v930 = vsub.s32 0, %v929
    %v931 = vrot.slane %v926, %v930
    %v949 = vunpack.c.l.b16 %v910
    %v950 = vunpack.c.l.b16 %v911
    %v951 = vunpack.c.l.b16 %v912
    %v952 = vunpack.c.l.b16 %v913
    %v953 = vunpack.c.l.b16 %v914
    %v954 = vunpack.c.l.b16 %v915
    %v955 = vunpack.c.l.b16 %v916
    %v956 = vunpack.c.l.b16 %v917
    %v957 = vunpack.c.l.b16 %v918
    %v958 = vunpack.c.l.b16 %v919
    %v959 = vunpack.c.l.b16 %v920
    %v960 = vunpack.c.l.b16 %v921
    %v961 = vunpack.c.l.b16 %v922
    %v962 = vunpack.c.l.b16 %v923
    %v963 = vunpack.c.l.b16 %v924
    %v964 = vunpack.c.l.b16 %v925
    %v965 = vpack.c.b16 %v950, %v949
    %v966 = vpack.c.b16 %v952, %v951
    %v967 = vpack.c.b16 %v954, %v953
    %v968 = vpack.c.b16 %v956, %v955
    %v969 = vpack.c.b16 %v958, %v957
    %v970 = vpack.c.b16 %v960, %v959
    %v971 = vpack.c.b16 %v962, %v961
    %v972 = vpack.c.b16 %v964, %v963
    %981 = vmatprep.subr.bf16.mxu0 0
    %982 = vmatpush1.bf16.msra.mxu0 %v972
    %983 = vmatprep.subr.bf16.mxu0 0
    %984 = vmatpush1.bf16.msra.mxu0 %v971
    %985 = vmatprep.subr.bf16.mxu0 0
    %986 = vmatpush1.bf16.msra.mxu0 %v970
    %987 = vmatprep.subr.bf16.mxu0 0
    %988 = vmatpush1.bf16.msra.mxu0 %v969
    %989 = vmatprep.subr.bf16.mxu0 0
    %990 = vmatpush1.bf16.msra.mxu0 %v968
    %991 = vmatprep.subr.bf16.mxu0 0
    %992 = vmatpush1.bf16.msra.mxu0 %v967
    %993 = vmatprep.subr.bf16.mxu0 0
    %994 = vmatpush1.bf16.msra.mxu0 %v966
    %995 = vmatprep.subr.bf16.mxu0 0
    %996 = vmatpush1.bf16.msra.mxu0 %v965
    %997 = vmatprep.subr.bf16.mxu0 0
    %998 = vmatpush2.bf16.msra.mxu0 0
    %999 = vmatprep.subr.bf16.mxu0 0
    %1000 = vmatpush2.bf16.msra.mxu0 0
    %1001 = vmatprep.subr.bf16.mxu0 0
    %1002 = vmatpush2.bf16.msra.mxu0 0
    %1003 = vmatprep.subr.bf16.mxu0 0
    %1004 = vmatpush2.bf16.msra.mxu0 0
    %1005 = vmatprep.subr.bf16.mxu0 0
    %1006 = vmatpush2.bf16.msra.mxu0 0
    %1007 = vmatprep.subr.bf16.mxu0 0
    %1008 = vmatpush2.bf16.msra.mxu0 0
    %1009 = vmatprep.subr.bf16.mxu0 0
    %1010 = vmatpush2.bf16.msra.mxu0 0
    %1011 = vmatprep.subr.bf16.mxu0 0
    %1012 = vmatpush2.bf16.msra.mxu0 0
    %1013 = vmatprep.mubr.bf16.mxu0 0
    %1014 = vmatmul.mubr.bf16.gmra.mxu0 %v909
    %v1015 = vpop.f32.mrf.mxu0
    %v1016 = vadd.f32 %v931, %v1015
    %v1017 = vpop.f32.mrf.mxu0
    %v1018 = vpop.f32.mrf.mxu0
    %v1019 = vpop.f32.mrf.mxu0
    %1020 = vdwg.mxu0
    %v1021 = vmax.f32 %v1016, 0.0
    %v1022 = vpack.c.bf16 %v1021, %v1021
    %v1023 = vld [vmem:[#allocation10] sm:$0xf]
    %v1024 = vld [vmem:[#allocation10 + $0x4] sm:$0xf]
    %v1025 = vld [vmem:[#allocation10 + $0x8] sm:$0xf]
    %v1026 = vld [vmem:[#allocation10 + $0xc] sm:$0xf]
    %v1027 = vld [vmem:[#allocation10 + $0x10] sm:$0xf]
    %v1028 = vld [vmem:[#allocation10 + $0x14] sm:$0xf]
    %v1029 = vld [vmem:[#allocation10 + $0x18] sm:$0xf]
    %v1030 = vld [vmem:[#allocation10 + $0x1c] sm:$0xf]
    %v1031 = vld [vmem:[#allocation10 + $0x20] sm:$0xf]
    %v1032 = vld [vmem:[#allocation10 + $0x24] sm:$0xf]
    %v1033 = vld [vmem:[#allocation10 + $0x28] sm:$0xf]
    %v1034 = vld [vmem:[#allocation10 + $0x2c] sm:$0xf]
    %v1035 = vld [vmem:[#allocation10 + $0x30] sm:$0xf]
    %v1036 = vld [vmem:[#allocation10 + $0x34] sm:$0xf]
    %v1037 = vld [vmem:[#allocation10 + $0x38] sm:$0xf]
    %v1038 = vld [vmem:[#allocation10 + $0x3c] sm:$0xf]
    %v1039 = vld [vmem:[%s8] sm:$0x1]
    %v1041 = vlaneseq
    %v1042 = vshrl.u32 %v1041, 7
    %v1043 = vsub.s32 0, %v1042
    %v1044 = vrot.slane %v1039, %v1043
    %v1062 = vunpack.c.l.b16 %v1023
    %v1063 = vunpack.c.l.b16 %v1024
    %v1064 = vunpack.c.l.b16 %v1025
    %v1065 = vunpack.c.l.b16 %v1026
    %v1066 = vunpack.c.l.b16 %v1027
    %v1067 = vunpack.c.l.b16 %v1028
    %v1068 = vunpack.c.l.b16 %v1029
    %v1069 = vunpack.c.l.b16 %v1030
    %v1070 = vunpack.c.l.b16 %v1031
    %v1071 = vunpack.c.l.b16 %v1032
    %v1072 = vunpack.c.l.b16 %v1033
    %v1073 = vunpack.c.l.b16 %v1034
    %v1074 = vunpack.c.l.b16 %v1035
    %v1075 = vunpack.c.l.b16 %v1036
    %v1076 = vunpack.c.l.b16 %v1037
    %v1077 = vunpack.c.l.b16 %v1038
    %v1078 = vpack.c.b16 %v1063, %v1062
    %v1079 = vpack.c.b16 %v1065, %v1064
    %v1080 = vpack.c.b16 %v1067, %v1066
    %v1081 = vpack.c.b16 %v1069, %v1068
    %v1082 = vpack.c.b16 %v1071, %v1070
    %v1083 = vpack.c.b16 %v1073, %v1072
    %v1084 = vpack.c.b16 %v1075, %v1074
    %v1085 = vpack.c.b16 %v1077, %v1076
    %1094 = vmatprep.subr.bf16.mxu0 0
    %1095 = vmatpush1.bf16.msra.mxu0 %v1085
    %1096 = vmatprep.subr.bf16.mxu0 0
    %1097 = vmatpush1.bf16.msra.mxu0 %v1084
    %1098 = vmatprep.subr.bf16.mxu0 0
    %1099 = vmatpush1.bf16.msra.mxu0 %v1083
    %1100 = vmatprep.subr.bf16.mxu0 0
    %1101 = vmatpush1.bf16.msra.mxu0 %v1082
    %1102 = vmatprep.subr.bf16.mxu0 0
    %1103 = vmatpush1.bf16.msra.mxu0 %v1081
    %1104 = vmatprep.subr.bf16.mxu0 0
    %1105 = vmatpush1.bf16.msra.mxu0 %v1080
    %1106 = vmatprep.subr.bf16.mxu0 0
    %1107 = vmatpush1.bf16.msra.mxu0 %v1079
    %1108 = vmatprep.subr.bf16.mxu0 0
    %1109 = vmatpush1.bf16.msra.mxu0 %v1078
    %1110 = vmatprep.subr.bf16.mxu0 0
    %1111 = vmatpush2.bf16.msra.mxu0 0
    %1112 = vmatprep.subr.bf16.mxu0 0
    %1113 = vmatpush2.bf16.msra.mxu0 0
    %1114 = vmatprep.subr.bf16.mxu0 0
    %1115 = vmatpush2.bf16.msra.mxu0 0
    %1116 = vmatprep.subr.bf16.mxu0 0
    %1117 = vmatpush2.bf16.msra.mxu0 0
    %1118 = vmatprep.subr.bf16.mxu0 0
    %1119 = vmatpush2.bf16.msra.mxu0 0
    %1120 = vmatprep.subr.bf16.mxu0 0
    %1121 = vmatpush2.bf16.msra.mxu0 0
    %1122 = vmatprep.subr.bf16.mxu0 0
    %1123 = vmatpush2.bf16.msra.mxu0 0
    %1124 = vmatprep.subr.bf16.mxu0 0
    %1125 = vmatpush2.bf16.msra.mxu0 0
    %1126 = vmatprep.mubr.bf16.mxu0 0
    %1127 = vmatmul.mubr.bf16.gmra.mxu0 %v1022
    %v1128 = vpop.f32.mrf.mxu0
    %v1129 = vadd.f32 %v1044, %v1128
    %v1130 = vpop.f32.mrf.mxu0
    %v1131 = vpop.f32.mrf.mxu0
    %v1132 = vpop.f32.mrf.mxu0
    %1133 = vdwg.mxu0
    %v1134 = vpack.c.bf16 %v1129, %v1129
    %1135 = vst [vmem:[#allocation11] sm:$0xf] %v1134
    // Predicated region
    $region58: #{tpu_custom_call.1} parent=1 // pred_check
      _
    $region59: #{tpu_custom_call.1} parent=1 // pred_check_branch
      %1137 = sbr.rel (0) target = $region61
    $region60: #{tpu_custom_call.1} parent=1 // pred_region
      %s1139 = ssub.s32 64, 64
      %1140 = vsyncadd [#allocation4], %s1139
      %s1142 = sshll.u32 [#allocation11], 4
      %s1143 = int_to_ptr.vmem [resolvable:$true] %s1142
      %1145 = dma.vmem_to_hbm [thread:$0]  %s1143, 64, %s9, [#allocation4]
    $region61: #{tpu_custom_call.1} parent=1 // pred_fallthru
      _
    // Predicated region
    $region62: #{tpu_custom_call.1} parent=1 // pred_check
      _
    $region63: #{tpu_custom_call.1} parent=1 // pred_check_branch
      %1147 = sbr.rel (0) target = $region65
    $region64: #{tpu_custom_call.1} parent=1 // pred_region
      %1148 = dma.done [#allocation4], 64
    $region65: #{tpu_custom_call.1} parent=1 // pred_fallthru
      _
    %1149 = vsyncpa [#allocation3], 1
    %1150 = vsyncpa [#allocation6], 1
    %1151 = vsyncpa [#allocation9], 1
    %1152 = vsyncpa [#allocation4], 1

</llo_original>
